<compile_context>
chip_gen: v5e
topology: v5e:2x2
jax: 0.10.0
libtpu: 0.0.40
codegen_flags: <defaults>
</compile_context>

<pallas_src>
import jax
import jax.numpy as jnp
from jax.experimental import pallas as pl
from jax.experimental.pallas import tpu as pltpu


LANE = 128       # TPU lane width: feature axes padded to multiples of this
SUBLANE = 8      # f32 sublane packing: batch tiles are multiples of this
NEG_INF = -1e30  # bias for padded output columns -> exp() underflows to exactly 0


def _round_up(n, m):
    return (n + m - 1) // m * m


def _vmem_bytes(shape, dtype, buffers=1):
    """VMEM footprint of one block: (sublane, lane)-padded, times #pipeline buffers."""
    rows = _round_up(int(shape[-2]), SUBLANE)
    cols = _round_up(int(shape[-1]), LANE)
    return buffers * rows * cols * jnp.dtype(dtype).itemsize


def _vmem_capacity_bytes():
    """Per-core VMEM capacity; falls back to the smallest production value (v7x, 64 MiB)."""
    try:
        return int(pltpu.get_tpu_info().vmem_capacity_bytes)
    except Exception:
        return 64 << 20


# --------------------------------------------------------------------------- kernels
def _mlp_kernel_resident(x_ref, w1_ref, b1_ref, w2_ref, b2_ref, w3_ref, b3_ref, o_ref):
    """All weights VMEM-resident; one batch tile per grid step."""
    cdt = w1_ref.dtype                     # bf16 weights => bf16 MXU operands on all gens
    x = x_ref[...].astype(cdt)

    h = jnp.dot(x, w1_ref[...], preferred_element_type=jnp.float32) + b1_ref[...]
    h = jnp.maximum(h, 0.0)

    h = jnp.dot(h.astype(cdt), w2_ref[...], preferred_element_type=jnp.float32) + b2_ref[...]
    h = jnp.maximum(h, 0.0)

    logits = jnp.dot(h.astype(cdt), w3_ref[...], preferred_element_type=jnp.float32) + b3_ref[...]
    m = jnp.max(logits, axis=-1, keepdims=True)
    e = jnp.exp(logits - m)
    o_ref[...] = (e / jnp.sum(e, axis=-1, keepdims=True)).astype(o_ref.dtype)


def _mlp_kernel_hidden_tiled(x_ref, w1_ref, b1_ref, w2_ref, b2_ref, w3_ref, b3_ref,
                             o_ref, acc_ref):
    """Fallback when w1/w2 don't fit VMEM: grid=(batch, hidden_block); layer-2 output is
    accumulated over hidden blocks in a f32 VMEM scratch, layer 3 + softmax run on the
    last block."""
    k = pl.program_id(1)
    cdt = w1_ref.dtype
    x = x_ref[...].astype(cdt)

    # Layer 1 for this hidden-column block.
    h1 = jnp.dot(x, w1_ref[...], preferred_element_type=jnp.float32) + b1_ref[...]
    h1 = jnp.maximum(h1, 0.0)

    @pl.when(k == 0)
    def _():
        acc_ref[...] = jnp.broadcast_to(b2_ref[...], acc_ref.shape)

    # Layer 2 partial product (K-accumulation over hidden blocks).
    acc_ref[...] += jnp.dot(h1.astype(cdt), w2_ref[...], preferred_element_type=jnp.float32)

    @pl.when(k == pl.num_programs(1) - 1)
    def _():
        h2 = jnp.maximum(acc_ref[...], 0.0)
        logits = (jnp.dot(h2.astype(cdt), w3_ref[...], preferred_element_type=jnp.float32)
                  + b3_ref[...])
        m = jnp.max(logits, axis=-1, keepdims=True)
        e = jnp.exp(logits - m)
        o_ref[...] = (e / jnp.sum(e, axis=-1, keepdims=True)).astype(o_ref.dtype)


# --------------------------------------------------------------------------- wrapper
def prepare_params(params, *, compute_dtype=jnp.float32):
    """Pad feature axes to the lane width and cast the matmul operands ONCE, outside the
    per-call hot path. bf16 weights are a fast path on v5e/v6e/v7x alike (the MXU consumes
    bf16 natively); accumulation and elementwise work stay f32 in the kernel."""
    in_dim, hidden_dim = params["w1"].shape
    out_dim = params["w3"].shape[1]
    in_p = _round_up(in_dim, LANE)
    hid_p = _round_up(hidden_dim, LANE)
    out_p = _round_up(out_dim, LANE)

    def pad2(a, shape, fill=0.0):
        a = jnp.asarray(a, jnp.float32)
        return jnp.pad(a, ((0, shape[0] - a.shape[0]), (0, shape[1] - a.shape[1])),
                       constant_values=fill)

    packed = {
        "w1": pad2(params["w1"], (in_p, hid_p)).astype(compute_dtype),
        "w2": pad2(params["w2"], (hid_p, hid_p)).astype(compute_dtype),
        "w3": pad2(params["w3"], (hid_p, out_p)).astype(compute_dtype),
        "b1": pad2(params["b1"], (1, hid_p)),
        "b2": pad2(params["b2"], (1, hid_p)),
        # Padded logit columns get -1e30 bias so exp() is exactly 0 there and the softmax over
        # the padded axis equals nn.Softmax on the real columns.
        "b3": pad2(params["b3"], (1, out_p), fill=NEG_INF),
    }
    dims = dict(in_dim=in_dim, hidden_dim=hidden_dim, out_dim=out_dim,
                in_p=in_p, hid_p=hid_p, out_p=out_p)
    return packed, dims


def mlp_forward(x, packed, dims, *, tile_b=None, hidden_block=None):
    """x: [B, in_dim] f32. packed/dims: output of prepare_params. Returns [B, out_dim] f32."""
    B = x.shape[0]
    in_dim, out_dim = dims["in_dim"], dims["out_dim"]
    in_p, hid_p, out_p = dims["in_p"], dims["hid_p"], dims["out_p"]
    w1, b1, w2, b2, w3, b3 = (packed[k] for k in ("w1", "b1", "w2", "b2", "w3", "b3"))
    wdt = w1.dtype

    vmem_cap = _vmem_capacity_bytes()
    usable = int(0.85 * vmem_cap)          # headroom for Mosaic internal scratch
    small_vmem = vmem_cap <= (96 << 20)    # v7x-class (64 MiB/TC) vs v5e/v6e (128 MiB)

    # --- VMEM footprint models (single-buffered resident weights, double-buffered tiles) ---
    weight_bytes = (_vmem_bytes(w1.shape, wdt) + _vmem_bytes(w2.shape, wdt)
                    + _vmem_bytes(w3.shape, wdt)
                    + _vmem_bytes(b1.shape, jnp.float32) + _vmem_bytes(b2.shape, jnp.float32)
                    + _vmem_bytes(b3.shape, jnp.float32))

    def tiles_bytes(tb):
        return (_vmem_bytes((tb, in_p), jnp.float32, buffers=2)
                + _vmem_bytes((tb, out_p), jnp.float32, buffers=2))

    def footprint_resident(tb):
        return weight_bytes + tiles_bytes(tb)

    def footprint_tiled(tb, tk):
        return (_vmem_bytes((in_p, tk), wdt, 2) + _vmem_bytes((1, tk), jnp.float32, 2)
                + _vmem_bytes((tk, hid_p), wdt, 2)
                + _vmem_bytes((1, hid_p), jnp.float32, 1)
                + _vmem_bytes((hid_p, out_p), wdt, 1) + _vmem_bytes((1, out_p), jnp.float32, 1)
                + _vmem_bytes((tb, hid_p), jnp.float32, 1)       # f32 accumulator scratch
                + tiles_bytes(tb))

    # --- choose the plan -------------------------------------------------------------
    if tile_b is None:
        max_tile = 256 if small_vmem else 1024
        tile_b = min(max_tile, _round_up(B, SUBLANE))
        if B > 256:   # >=2 grid steps so both v7x TensorCores get work
            tile_b = min(tile_b, max(256, _round_up((B + 1) // 2, 256)))
    tile_b = max(SUBLANE, _round_up(min(tile_b, _round_up(B, SUBLANE)), SUBLANE))

    use_hidden_tiling = hidden_block is not None
    if not use_hidden_tiling:
        while tile_b > SUBLANE and footprint_resident(tile_b) > usable:
            tile_b = _round_up(tile_b // 2, SUBLANE)
        use_hidden_tiling = footprint_resident(tile_b) > usable

    tile_k = None
    if use_hidden_tiling:
        if hidden_block is not None:
            assert hidden_block % LANE == 0 and hid_p % hidden_block == 0, \
                "hidden_block must be a multiple of 128 that divides the padded hidden dim"
            tile_k = hidden_block
        else:
            for cand in (4096, 2048, 1024, 512, 256, 128):
                if hid_p % cand == 0 and footprint_tiled(tile_b, cand) <= usable:
                    tile_k = cand
                    break
            if tile_k is None:
                tile_k = LANE
                while tile_b > SUBLANE and footprint_tiled(tile_b, tile_k) > usable:
                    tile_b = _round_up(tile_b // 2, SUBLANE)

    B_p = _round_up(B, tile_b)
    x_p = jnp.pad(x.astype(jnp.float32), ((0, B_p - B), (0, in_p - in_dim)))

    need = footprint_tiled(tile_b, tile_k) if use_hidden_tiling else footprint_resident(tile_b)
    cp = {}
    if need > (16 << 20):                 # smallest default scoped-VMEM limit (v5e)
        cp["vmem_limit_bytes"] = usable   # generation-aware cap (~0.85x per-core capacity)

    # --- build specs -------------------------------------------------------------------
    if not use_hidden_tiling:
        grid = (B_p // tile_b,)
        resident = lambda shape: pl.BlockSpec(shape, lambda i: (0, 0),
                                              pipeline_mode=pl.Buffered(1))
        in_specs = [
            pl.BlockSpec((tile_b, in_p), lambda i: (i, 0)),    # x: batch-tiled, pipelined
            resident((in_p, hid_p)), resident((1, hid_p)),     # w1, b1 (VMEM-resident, 1 buf)
            resident((hid_p, hid_p)), resident((1, hid_p)),    # w2, b2
            resident((hid_p, out_p)), resident((1, out_p)),    # w3, b3
        ]
        out_specs = pl.BlockSpec((tile_b, out_p), lambda i: (i, 0))  # lane-dense store
        scratch_shapes = []
        kernel = _mlp_kernel_resident
        cp["dimension_semantics"] = ("parallel",)
    else:
        grid = (B_p // tile_b, hid_p // tile_k)
        resident = lambda shape: pl.BlockSpec(shape, lambda i, k: (0, 0),
                                              pipeline_mode=pl.Buffered(1))
        in_specs = [
            pl.BlockSpec((tile_b, in_p), lambda i, k: (i, 0)),   # x (constant across k)
            pl.BlockSpec((in_p, tile_k), lambda i, k: (0, k)),   # w1 column block (pipelined)
            pl.BlockSpec((1, tile_k), lambda i, k: (0, k)),      # b1 block
            pl.BlockSpec((tile_k, hid_p), lambda i, k: (k, 0)),  # w2 row block (pipelined)
            resident((1, hid_p)),                                # b2
            resident((hid_p, out_p)), resident((1, out_p)),      # w3, b3
        ]
        out_specs = pl.BlockSpec((tile_b, out_p), lambda i, k: (i, 0))
        scratch_shapes = [pltpu.VMEM((tile_b, hid_p), jnp.float32)]
        kernel = _mlp_kernel_hidden_tiled
        cp["dimension_semantics"] = ("parallel", "arbitrary")

    out_padded = pl.pallas_call(
        kernel,
        out_shape=jax.ShapeDtypeStruct((B_p, out_p), jnp.float32),
        grid=grid,
        in_specs=in_specs,
        out_specs=out_specs,
        scratch_shapes=scratch_shapes,
        compiler_params=pltpu.CompilerParams(**cp),
    )(x_p, w1, b1, w2, b2, w3, b3)

    return out_padded[:B, :out_dim]


def init_params(key, in_dim, hidden_dim, out_dim):
    """Deterministic init mimicking PyTorch nn.Linear default (uniform +/- 1/sqrt(fan_in)).
    Weights stored as [in_features, out_features] (transposed vs. PyTorch's [out, in])."""
    def linear(k, fan_in, fan_out):
        kw, kb = jax.random.split(k)
        bound = 1.0 / jnp.sqrt(float(fan_in))
        w = jax.random.uniform(kw, (fan_in, fan_out), jnp.float32, -bound, bound)
        b = jax.random.uniform(kb, (1, fan_out), jnp.float32, -bound, bound)
        return w, b

    k1, k2, k3 = jax.random.split(key, 3)
    w1, b1 = linear(k1, in_dim, hidden_dim)
    w2, b2 = linear(k2, hidden_dim, hidden_dim)
    w3, b3 = linear(k3, hidden_dim, out_dim)
    return dict(w1=w1, b1=b1, w2=w2, b2=b2, w3=w3, b3=b3)


if __name__ == "__main__":
    key = jax.random.PRNGKey(0)
    kx, kp, kx2, kp2 = jax.random.split(key, 4)

    # plain-JAX reference (matches the PyTorch MLP forward: Linear/ReLU x2, Linear, Softmax)
    def ref(x, p):
        hp = jax.lax.Precision.HIGHEST
        h = jnp.maximum(jnp.dot(x, p["w1"], precision=hp) + p["b1"], 0.0)
        h = jnp.maximum(jnp.dot(h, p["w2"], precision=hp) + p["b2"], 0.0)
        return jax.nn.softmax(jnp.dot(h, p["w3"], precision=hp) + p["b3"], axis=-1)

    # --- fused, fully weight-resident path (f32 and bf16 matmul operands) ---
    batch, in_dim, hidden_dim, out_dim = 8, 16, 32, 8  # num_layers = 3
    x = jax.random.normal(kx, (batch, in_dim), dtype=jnp.float32)
    params = init_params(kp, in_dim, hidden_dim, out_dim)
    expected = ref(x, params)

    packed_f32, dims = prepare_params(params, compute_dtype=jnp.float32)
    out_f32 = jax.block_until_ready(mlp_forward(x, packed_f32, dims))
    assert out_f32.shape == (batch, out_dim)
    assert jnp.allclose(out_f32, expected, atol=2e-3), \
        float(jnp.max(jnp.abs(out_f32 - expected)))
    assert jnp.allclose(jnp.sum(out_f32, axis=-1), 1.0, atol=1e-4)

    packed_bf16, dims_bf = prepare_params(params, compute_dtype=jnp.bfloat16)
    out_bf16 = jax.block_until_ready(mlp_forward(x, packed_bf16, dims_bf))
    assert out_bf16.shape == (batch, out_dim)
    assert jnp.allclose(out_bf16, expected, atol=3e-2), \
        float(jnp.max(jnp.abs(out_bf16 - expected)))
    assert jnp.allclose(jnp.sum(out_bf16, axis=-1), 1.0, atol=1e-3)

    # --- hidden-axis tiled fallback path (forced here with a 128-wide hidden block) ---
    batch2, hidden2 = 16, 256
    x2 = jax.random.normal(kx2, (batch2, in_dim), dtype=jnp.float32)
    params2 = init_params(kp2, in_dim, hidden2, out_dim)
    expected2 = ref(x2, params2)
    packed2, dims2 = prepare_params(params2, compute_dtype=jnp.float32)
    out2 = jax.block_until_ready(mlp_forward(x2, packed2, dims2, hidden_block=128))
    assert out2.shape == (batch2, out_dim)
    assert jnp.allclose(out2, expected2, atol=2e-3), \
        float(jnp.max(jnp.abs(out2 - expected2)))
    assert jnp.allclose(jnp.sum(out2, axis=-1), 1.0, atol=1e-4)

    print("KERNEL_OK")
</pallas_src>

<mosaic_0001>
module attributes {stable_mosaic.version = 11 : i64} {
  func.func @_mlp_kernel_resident(%arg0: i32, %arg1: memref<8x128xf32, #tpu.memory_space<vmem>>, %arg2: memref<128x128xf32, #tpu.memory_space<vmem>>, %arg3: memref<1x128xf32, #tpu.memory_space<vmem>>, %arg4: memref<128x128xf32, #tpu.memory_space<vmem>>, %arg5: memref<1x128xf32, #tpu.memory_space<vmem>>, %arg6: memref<128x128xf32, #tpu.memory_space<vmem>>, %arg7: memref<1x128xf32, #tpu.memory_space<vmem>>, %arg8: memref<8x128xf32, #tpu.memory_space<vmem>>) attributes {dimension_semantics = [#tpu.dimension_semantics<parallel>], iteration_bounds = array<i64: 1>, scalar_prefetch = 0 : i64, scratch_operands = 0 : i64, tpu.core_type = #tpu.core_type<tc>, window_params = [{transform_indices = @transform_0, window_bounds = array<i64: 8, 128>}, {pipeline_mode = #tpu.pipeline_mode<synchronous>, transform_indices = @transform_1, window_bounds = array<i64: 128, 128>}, {pipeline_mode = #tpu.pipeline_mode<synchronous>, transform_indices = @transform_2, window_bounds = array<i64: 1, 128>}, {pipeline_mode = #tpu.pipeline_mode<synchronous>, transform_indices = @transform_3, window_bounds = array<i64: 128, 128>}, {pipeline_mode = #tpu.pipeline_mode<synchronous>, transform_indices = @transform_4, window_bounds = array<i64: 1, 128>}, {pipeline_mode = #tpu.pipeline_mode<synchronous>, transform_indices = @transform_5, window_bounds = array<i64: 128, 128>}, {pipeline_mode = #tpu.pipeline_mode<synchronous>, transform_indices = @transform_6, window_bounds = array<i64: 1, 128>}, {transform_indices = @transform_7, window_bounds = array<i64: 8, 128>}]} {
    %c0 = arith.constant 0 : index
    %c0_0 = arith.constant 0 : index
    %0 = vector.load %arg1[%c0, %c0_0] : memref<8x128xf32, #tpu.memory_space<vmem>>, vector<8x128xf32>
    %c0_1 = arith.constant 0 : index
    %c0_2 = arith.constant 0 : index
    %1 = vector.load %arg2[%c0_1, %c0_2] : memref<128x128xf32, #tpu.memory_space<vmem>>, vector<128x128xf32>
    %cst = arith.constant dense<0.000000e+00> : vector<8x128xf32>
    %2 = tpu.matmul %0, %1, %cst {dimension_numbers = #tpu.dot_dimension_numbers<[1], [0], [0], [1], [0, 0, 1, 1], [], []>} : vector<8x128xf32>, vector<128x128xf32>, vector<8x128xf32> -> vector<8x128xf32>
    %c0_3 = arith.constant 0 : index
    %c0_4 = arith.constant 0 : index
    %3 = vector.load %arg3[%c0_3, %c0_4] : memref<1x128xf32, #tpu.memory_space<vmem>>, vector<1x128xf32>
    %4 = vector.broadcast %3 : vector<1x128xf32> to vector<8x128xf32>
    %5 = arith.addf %2, %4 : vector<8x128xf32>
    %cst_5 = arith.constant 0.000000e+00 : f32
    %6 = vector.broadcast %cst_5 : f32 to vector<8x128xf32>
    %7 = arith.maximumf %5, %6 : vector<8x128xf32>
    %c0_6 = arith.constant 0 : index
    %c0_7 = arith.constant 0 : index
    %8 = vector.load %arg4[%c0_6, %c0_7] : memref<128x128xf32, #tpu.memory_space<vmem>>, vector<128x128xf32>
    %cst_8 = arith.constant dense<0.000000e+00> : vector<8x128xf32>
    %9 = tpu.matmul %7, %8, %cst_8 {dimension_numbers = #tpu.dot_dimension_numbers<[1], [0], [0], [1], [0, 0, 1, 1], [], []>} : vector<8x128xf32>, vector<128x128xf32>, vector<8x128xf32> -> vector<8x128xf32>
    %c0_9 = arith.constant 0 : index
    %c0_10 = arith.constant 0 : index
    %10 = vector.load %arg5[%c0_9, %c0_10] : memref<1x128xf32, #tpu.memory_space<vmem>>, vector<1x128xf32>
    %11 = vector.broadcast %10 : vector<1x128xf32> to vector<8x128xf32>
    %12 = arith.addf %9, %11 : vector<8x128xf32>
    %cst_11 = arith.constant 0.000000e+00 : f32
    %13 = vector.broadcast %cst_11 : f32 to vector<8x128xf32>
    %14 = arith.maximumf %12, %13 : vector<8x128xf32>
    %c0_12 = arith.constant 0 : index
    %c0_13 = arith.constant 0 : index
    %15 = vector.load %arg6[%c0_12, %c0_13] : memref<128x128xf32, #tpu.memory_space<vmem>>, vector<128x128xf32>
    %cst_14 = arith.constant dense<0.000000e+00> : vector<8x128xf32>
    %16 = tpu.matmul %14, %15, %cst_14 {dimension_numbers = #tpu.dot_dimension_numbers<[1], [0], [0], [1], [0, 0, 1, 1], [], []>} : vector<8x128xf32>, vector<128x128xf32>, vector<8x128xf32> -> vector<8x128xf32>
    %c0_15 = arith.constant 0 : index
    %c0_16 = arith.constant 0 : index
    %17 = vector.load %arg7[%c0_15, %c0_16] : memref<1x128xf32, #tpu.memory_space<vmem>>, vector<1x128xf32>
    %18 = vector.broadcast %17 : vector<1x128xf32> to vector<8x128xf32>
    %19 = arith.addf %16, %18 : vector<8x128xf32>
    %cst_17 = arith.constant dense<0xFF800000> : vector<8xf32>
    %20 = vector.multi_reduction <maximumf>, %19, %cst_17 [1] : vector<8x128xf32> to vector<8xf32>
    %21 = vector.shape_cast %20 : vector<8xf32> to vector<8x1xf32>
    %22 = vector.broadcast %21 : vector<8x1xf32> to vector<8x128xf32>
    %23 = arith.subf %19, %22 : vector<8x128xf32>
    %24 = math.exp %23 : vector<8x128xf32>
    %cst_18 = arith.constant dense<0.000000e+00> : vector<8xf32>
    %25 = vector.multi_reduction <add>, %24, %cst_18 [1] : vector<8x128xf32> to vector<8xf32>
    %26 = vector.shape_cast %25 : vector<8xf32> to vector<8x1xf32>
    %27 = vector.broadcast %26 : vector<8x1xf32> to vector<8x128xf32>
    %28 = arith.divf %24, %27 : vector<8x128xf32>
    %c0_19 = arith.constant 0 : index
    %c0_20 = arith.constant 0 : index
    %29 = vector.load %arg8[%c0_19, %c0_20] : memref<8x128xf32, #tpu.memory_space<vmem>>, vector<8x128xf32>
    tpu.vector_store %arg8[%c0_19, %c0_20], %28 {strides = array<i32>} : memref<8x128xf32, #tpu.memory_space<vmem>>, vector<8x128xf32>,
    return
  }
  func.func @transform_0(%arg0: i32) -> (i32, i32) {
    %c0_i32 = arith.constant 0 : i32
    %c0_i32_0 = arith.constant 0 : i32
    return %arg0, %c0_i32 : i32, i32
  }
  func.func @transform_1(%arg0: i32) -> (i32, i32) {
    %c0_i32 = arith.constant 0 : i32
    %c0_i32_0 = arith.constant 0 : i32
    %c0_i32_1 = arith.constant 0 : i32
    return %c0_i32, %c0_i32_0 : i32, i32
  }
  func.func @transform_2(%arg0: i32) -> (i32, i32) {
    %c0_i32 = arith.constant 0 : i32
    %c0_i32_0 = arith.constant 0 : i32
    %c0_i32_1 = arith.constant 0 : i32
    return %c0_i32, %c0_i32_0 : i32, i32
  }
  func.func @transform_3(%arg0: i32) -> (i32, i32) {
    %c0_i32 = arith.constant 0 : i32
    %c0_i32_0 = arith.constant 0 : i32
    %c0_i32_1 = arith.constant 0 : i32
    return %c0_i32, %c0_i32_0 : i32, i32
  }
  func.func @transform_4(%arg0: i32) -> (i32, i32) {
    %c0_i32 = arith.constant 0 : i32
    %c0_i32_0 = arith.constant 0 : i32
    %c0_i32_1 = arith.constant 0 : i32
    return %c0_i32, %c0_i32_0 : i32, i32
  }
  func.func @transform_5(%arg0: i32) -> (i32, i32) {
    %c0_i32 = arith.constant 0 : i32
    %c0_i32_0 = arith.constant 0 : i32
    %c0_i32_1 = arith.constant 0 : i32
    return %c0_i32, %c0_i32_0 : i32, i32
  }
  func.func @transform_6(%arg0: i32) -> (i32, i32) {
    %c0_i32 = arith.constant 0 : i32
    %c0_i32_0 = arith.constant 0 : i32
    %c0_i32_1 = arith.constant 0 : i32
    return %c0_i32, %c0_i32_0 : i32, i32
  }
  func.func @transform_7(%arg0: i32) -> (i32, i32) {
    %c0_i32 = arith.constant 0 : i32
    %c0_i32_0 = arith.constant 0 : i32
    return %arg0, %c0_i32 : i32, i32
  }
}

</mosaic_0001>

<llo_original>
// kernel: tpu_custom_call.1
$region0: #{tpu_custom_call.1}
  #allocation0 [shape = 'u32[]', space=smem, size = 0x4, offset = 0x4, fixed_abs, tag = 'smem constant byte address 0x4 - core index']
  #allocation1 [shape = 'u32[72,128]{1,0:T(1,128)}', space=vmem, size = 0x9000, scoped, tag = 'internal scratch']
  %s0 = inlined_call_operand.hbm [shape: f32[8,128], index: 0, kind: input, shape index: {}]
  %s1 = inlined_call_operand.hbm [shape: f32[128,128], index: 1, kind: input, shape index: {}]
  %s2 = inlined_call_operand.vmem [shape: f32[1,128], index: 2, kind: input, shape index: {}]
  %s3 = inlined_call_operand.hbm [shape: f32[128,128], index: 3, kind: input, shape index: {}]
  %s4 = inlined_call_operand.vmem [shape: f32[1,128], index: 4, kind: input, shape index: {}]
  %s5 = inlined_call_operand.hbm [shape: f32[128,128], index: 5, kind: input, shape index: {}]
  %s6 = inlined_call_operand.vmem [shape: f32[1,128], index: 6, kind: input, shape index: {}]
  %s7 = inlined_call_operand.hbm [shape: f32[8,128], index: 7, kind: output, shape index: {}]
  %s8 = sld [smem:[#allocation0]]
  $region54: #{tpu_custom_call.1} parent=0
    _
  %s10 = ssub.s32 1, %s8
  %s11 = scalar_select 0, %s10, %s8
  $region1: #{tpu_custom_call.1} parent=0
    #allocation2 [shape = 'u8[4096]{0}', space=vmem, size = 0x1000, scoped, tag = 'input window, operand 0, single buffered']
    #allocation3 [shape = 's32[1]{0}', space=sflag, size = 0x4, scoped, tag = 'scoped memory for tpu_custom_call.1']
    #allocation4 [shape = 's32[1]{0}', space=sflag, size = 0x4, scoped, tag = 'scoped memory for tpu_custom_call.1']
    #allocation5 [shape = 'u8[65536]{0}', space=vmem, size = 0x10000, scoped, tag = 'input window, operand 1, single buffered']
    #allocation6 [shape = 's32[1]{0}', space=sflag, size = 0x4, scoped, tag = 'scoped memory for tpu_custom_call.1']
    #allocation7 [shape = 'u8[65536]{0}', space=vmem, size = 0x10000, scoped, tag = 'input window, operand 3, single buffered']
    #allocation8 [shape = 'u8[65536]{0}', space=vmem, size = 0x10000, scoped, tag = 'input window, operand 5, single buffered']
    #allocation9 [shape = 's32[1]{0}', space=sflag, size = 0x4, scoped, tag = 'scoped memory for tpu_custom_call.1']
    #allocation10 [shape = 'u8[4096]{0}', space=vmem, size = 0x1000, scoped, tag = 'output window, operand 0, single buffered']
    %12 = vsyncpa [#allocation3], 0
    %13 = vsyncpa [#allocation6], 0
    %14 = vsyncpa [#allocation9], 0
    %15 = vsyncpa [#allocation4], 0
    // Predicated region
    $region2: #{tpu_custom_call.1} parent=1 // pred_check
      _
    $region3: #{tpu_custom_call.1} parent=1 // pred_check_branch
      %17 = sbr.rel (0) target = $region5
    $region4: #{tpu_custom_call.1} parent=1 // pred_region
      %19 = vsyncadd [#allocation3], 0
      %s21 = sshll.u32 %s0, 4
      %s22 = int_to_ptr.hbm [resolvable:$true] %s21
      %s23 = sshll.u32 [#allocation2], 4
      %s24 = int_to_ptr.vmem [resolvable:$true] %s23
      %26 = dma.hbm_to_vmem [thread:$0]  %s22, 128, %s24, [#allocation3]
    $region5: #{tpu_custom_call.1} parent=1 // pred_fallthru
      _
    // Predicated region
    $region6: #{tpu_custom_call.1} parent=1 // pred_check
      _
    $region7: #{tpu_custom_call.1} parent=1 // pred_check_branch
      %28 = sbr.rel (0) target = $region9
    $region8: #{tpu_custom_call.1} parent=1 // pred_region
      %30 = vsyncadd [#allocation6], 0
      %s31 = sshll.u32 %s1, 4
      %s32 = int_to_ptr.hbm [resolvable:$true] %s31
      %s33 = sshll.u32 [#allocation5], 4
      %s34 = int_to_ptr.vmem [resolvable:$true] %s33
      %39 = dma.hbm_to_vmem [thread:$0]  %s32, 2048, %s34, [#allocation6], 128, 128, 8
    $region9: #{tpu_custom_call.1} parent=1 // pred_fallthru
      _
    // Predicated region
    $region10: #{tpu_custom_call.1} parent=1 // pred_check
      _
    $region11: #{tpu_custom_call.1} parent=1 // pred_check_branch
      %41 = sbr.rel (0) target = $region13
    $region12: #{tpu_custom_call.1} parent=1 // pred_region
      _
    $region13: #{tpu_custom_call.1} parent=1 // pred_fallthru
      _
    // Predicated region
    $region14: #{tpu_custom_call.1} parent=1 // pred_check
      _
    $region15: #{tpu_custom_call.1} parent=1 // pred_check_branch
      %43 = sbr.rel (0) target = $region17
    $region16: #{tpu_custom_call.1} parent=1 // pred_region
      %45 = vsyncadd [#allocation6], 0
      %s46 = sshll.u32 %s3, 4
      %s47 = int_to_ptr.hbm [resolvable:$true] %s46
      %s48 = sshll.u32 [#allocation7], 4
      %s49 = int_to_ptr.vmem [resolvable:$true] %s48
      %54 = dma.hbm_to_vmem [thread:$0]  %s47, 2048, %s49, [#allocation6], 128, 128, 8
    $region17: #{tpu_custom_call.1} parent=1 // pred_fallthru
      _
    // Predicated region
    $region18: #{tpu_custom_call.1} parent=1 // pred_check
      _
    $region19: #{tpu_custom_call.1} parent=1 // pred_check_branch
      %56 = sbr.rel (0) target = $region21
    $region20: #{tpu_custom_call.1} parent=1 // pred_region
      _
    $region21: #{tpu_custom_call.1} parent=1 // pred_fallthru
      _
    // Predicated region
    $region22: #{tpu_custom_call.1} parent=1 // pred_check
      _
    $region23: #{tpu_custom_call.1} parent=1 // pred_check_branch
      %58 = sbr.rel (0) target = $region25
    $region24: #{tpu_custom_call.1} parent=1 // pred_region
      %60 = vsyncadd [#allocation9], 0
      %s61 = sshll.u32 %s5, 4
      %s62 = int_to_ptr.hbm [resolvable:$true] %s61
      %s63 = sshll.u32 [#allocation8], 4
      %s64 = int_to_ptr.vmem [resolvable:$true] %s63
      %69 = dma.hbm_to_vmem [thread:$0]  %s62, 2048, %s64, [#allocation9], 128, 128, 8
    $region25: #{tpu_custom_call.1} parent=1 // pred_fallthru
      _
    // Predicated region
    $region26: #{tpu_custom_call.1} parent=1 // pred_check
      _
    $region27: #{tpu_custom_call.1} parent=1 // pred_check_branch
      %71 = sbr.rel (0) target = $region29
    $region28: #{tpu_custom_call.1} parent=1 // pred_region
      _
    $region29: #{tpu_custom_call.1} parent=1 // pred_fallthru
      _
    // Predicated region
    $region30: #{tpu_custom_call.1} parent=1 // pred_check
      _
    $region31: #{tpu_custom_call.1} parent=1 // pred_check_branch
      %73 = sbr.rel (0) target = $region33
    $region32: #{tpu_custom_call.1} parent=1 // pred_region
      %75 = dma.done [#allocation3], 128
    $region33: #{tpu_custom_call.1} parent=1 // pred_fallthru
      _
    // Predicated region
    $region34: #{tpu_custom_call.1} parent=1 // pred_check
      _
    $region35: #{tpu_custom_call.1} parent=1 // pred_check_branch
      %77 = sbr.rel (0) target = $region37
    $region36: #{tpu_custom_call.1} parent=1 // pred_region
      %79 = dma.done [#allocation6], 2048
    $region37: #{tpu_custom_call.1} parent=1 // pred_fallthru
      _
    // Predicated region
    $region38: #{tpu_custom_call.1} parent=1 // pred_check
      _
    $region39: #{tpu_custom_call.1} parent=1 // pred_check_branch
      %81 = sbr.rel (0) target = $region41
    $region40: #{tpu_custom_call.1} parent=1 // pred_region
      %83 = dma.done [#allocation6], 2048
    $region41: #{tpu_custom_call.1} parent=1 // pred_fallthru
      _
    // Predicated region
    $region42: #{tpu_custom_call.1} parent=1 // pred_check
      _
    $region43: #{tpu_custom_call.1} parent=1 // pred_check_branch
      %85 = sbr.rel (0) target = $region45
    $region44: #{tpu_custom_call.1} parent=1 // pred_region
      %87 = dma.done [#allocation9], 2048
    $region45: #{tpu_custom_call.1} parent=1 // pred_fallthru
      _
    %v88 = vld [vmem:[#allocation2] sm:$0xff]
    %v89 = vld [vmem:[#allocation5] sm:$0xff]
    %v90 = vld [vmem:[#allocation5 + $0x8] sm:$0xff]
    %v91 = vld [vmem:[#allocation5 + $0x10] sm:$0xff]
    %v92 = vld [vmem:[#allocation5 + $0x18] sm:$0xff]
    %v93 = vld [vmem:[#allocation5 + $0x20] sm:$0xff]
    %v94 = vld [vmem:[#allocation5 + $0x28] sm:$0xff]
    %v95 = vld [vmem:[#allocation5 + $0x30] sm:$0xff]
    %v96 = vld [vmem:[#allocation5 + $0x38] sm:$0xff]
    %v97 = vld [vmem:[#allocation5 + $0x40] sm:$0xff]
    %v98 = vld [vmem:[#allocation5 + $0x48] sm:$0xff]
    %v99 = vld [vmem:[#allocation5 + $0x50] sm:$0xff]
    %v100 = vld [vmem:[#allocation5 + $0x58] sm:$0xff]
    %v101 = vld [vmem:[#allocation5 + $0x60] sm:$0xff]
    %v102 = vld [vmem:[#allocation5 + $0x68] sm:$0xff]
    %v103 = vld [vmem:[#allocation5 + $0x70] sm:$0xff]
    %v104 = vld [vmem:[#allocation5 + $0x78] sm:$0xff]
    %v105 = vld [vmem:[%s2] sm:$0x1]
    %v107 = vperm.slane %v105, 0
    %109 = vmatpush.msra.mxu0 %v104
    %110 = vmatpush.msra.mxu0 %v103
    %111 = vmatpush.msra.mxu0 %v102
    %112 = vmatpush.msra.mxu0 %v101
    %113 = vmatpush.msra.mxu0 %v100
    %114 = vmatpush.msra.mxu0 %v99
    %115 = vmatpush.msra.mxu0 %v98
    %116 = vmatpush.msra.mxu0 %v97
    %117 = vmatpush.msra.mxu0 %v96
    %118 = vmatpush.msra.mxu0 %v95
    %119 = vmatpush.msra.mxu0 %v94
    %120 = vmatpush.msra.mxu0 %v93
    %121 = vmatpush.msra.mxu0 %v92
    %122 = vmatpush.msra.mxu0 %v91
    %123 = vmatpush.msra.mxu0 %v90
    %124 = vmatpush.msra.mxu0 %v89
    %125 = vmatmul.f32.gmra.mxu0 %v88
    %v126 = vpop.f32.mrf.mxu0
    %v127 = vadd.f32 %v107, %v126
    %128 = vdwg.mxu0
    %v129 = vmax.f32 %v127, 0.0
    %v130 = vld [vmem:[#allocation7] sm:$0xff]
    %v131 = vld [vmem:[#allocation7 + $0x8] sm:$0xff]
    %v132 = vld [vmem:[#allocation7 + $0x10] sm:$0xff]
    %v133 = vld [vmem:[#allocation7 + $0x18] sm:$0xff]
    %v134 = vld [vmem:[#allocation7 + $0x20] sm:$0xff]
    %v135 = vld [vmem:[#allocation7 + $0x28] sm:$0xff]
    %v136 = vld [vmem:[#allocation7 + $0x30] sm:$0xff]
    %v137 = vld [vmem:[#allocation7 + $0x38] sm:$0xff]
    %v138 = vld [vmem:[#allocation7 + $0x40] sm:$0xff]
    %v139 = vld [vmem:[#allocation7 + $0x48] sm:$0xff]
    %v140 = vld [vmem:[#allocation7 + $0x50] sm:$0xff]
    %v141 = vld [vmem:[#allocation7 + $0x58] sm:$0xff]
    %v142 = vld [vmem:[#allocation7 + $0x60] sm:$0xff]
    %v143 = vld [vmem:[#allocation7 + $0x68] sm:$0xff]
    %v144 = vld [vmem:[#allocation7 + $0x70] sm:$0xff]
    %v145 = vld [vmem:[#allocation7 + $0x78] sm:$0xff]
    %v146 = vld [vmem:[%s4] sm:$0x1]
    %v148 = vperm.slane %v146, 0
    %150 = vmatpush.msra.mxu0 %v145
    %151 = vmatpush.msra.mxu0 %v144
    %152 = vmatpush.msra.mxu0 %v143
    %153 = vmatpush.msra.mxu0 %v142
    %154 = vmatpush.msra.mxu0 %v141
    %155 = vmatpush.msra.mxu0 %v140
    %156 = vmatpush.msra.mxu0 %v139
    %157 = vmatpush.msra.mxu0 %v138
    %158 = vmatpush.msra.mxu0 %v137
    %159 = vmatpush.msra.mxu0 %v136
    %160 = vmatpush.msra.mxu0 %v135
    %161 = vmatpush.msra.mxu0 %v134
    %162 = vmatpush.msra.mxu0 %v133
    %163 = vmatpush.msra.mxu0 %v132
    %164 = vmatpush.msra.mxu0 %v131
    %165 = vmatpush.msra.mxu0 %v130
    %166 = vmatmul.f32.gmra.mxu0 %v129
    %v167 = vpop.f32.mrf.mxu0
    %v168 = vadd.f32 %v148, %v167
    %169 = vdwg.mxu0
    %v170 = vmax.f32 %v168, 0.0
    %v171 = vld [vmem:[#allocation8] sm:$0xff]
    %v172 = vld [vmem:[#allocation8 + $0x8] sm:$0xff]
    %v173 = vld [vmem:[#allocation8 + $0x10] sm:$0xff]
    %v174 = vld [vmem:[#allocation8 + $0x18] sm:$0xff]
    %v175 = vld [vmem:[#allocation8 + $0x20] sm:$0xff]
    %v176 = vld [vmem:[#allocation8 + $0x28] sm:$0xff]
    %v177 = vld [vmem:[#allocation8 + $0x30] sm:$0xff]
    %v178 = vld [vmem:[#allocation8 + $0x38] sm:$0xff]
    %v179 = vld [vmem:[#allocation8 + $0x40] sm:$0xff]
    %v180 = vld [vmem:[#allocation8 + $0x48] sm:$0xff]
    %v181 = vld [vmem:[#allocation8 + $0x50] sm:$0xff]
    %v182 = vld [vmem:[#allocation8 + $0x58] sm:$0xff]
    %v183 = vld [vmem:[#allocation8 + $0x60] sm:$0xff]
    %v184 = vld [vmem:[#allocation8 + $0x68] sm:$0xff]
    %v185 = vld [vmem:[#allocation8 + $0x70] sm:$0xff]
    %v186 = vld [vmem:[#allocation8 + $0x78] sm:$0xff]
    %v187 = vld [vmem:[%s6] sm:$0x1]
    %v189 = vperm.slane %v187, 0
    %191 = vmatpush.msra.mxu0 %v186
    %192 = vmatpush.msra.mxu0 %v185
    %193 = vmatpush.msra.mxu0 %v184
    %194 = vmatpush.msra.mxu0 %v183
    %195 = vmatpush.msra.mxu0 %v182
    %196 = vmatpush.msra.mxu0 %v181
    %197 = vmatpush.msra.mxu0 %v180
    %198 = vmatpush.msra.mxu0 %v179
    %199 = vmatpush.msra.mxu0 %v178
    %200 = vmatpush.msra.mxu0 %v177
    %201 = vmatpush.msra.mxu0 %v176
    %202 = vmatpush.msra.mxu0 %v175
    %203 = vmatpush.msra.mxu0 %v174
    %204 = vmatpush.msra.mxu0 %v173
    %205 = vmatpush.msra.mxu0 %v172
    %206 = vmatpush.msra.mxu0 %v171
    %207 = vmatmul.f32.gmra.mxu0 %v170
    %v208 = vpop.f32.mrf.mxu0
    %v209 = vadd.f32 %v189, %v208
    %210 = vdwg.mxu0
    %211 = vmax.xlane.f32.xlu0 %v209
    %v212 = vpop.xlane.xlu0 %211
    %v213 = vsub.f32 %v209, %v212
    %v214 = vmul.f32 %v213, 1.442695
    %v215 = vpow.pop %v214
    %216 = vadd.xlane.f32.xlu0 %v215
    %v217 = vpop.xlane.xlu0 %216
    %v218 = vrcp.pop %v217
    %v219 = vmul.f32 %v217, %v218
    %v220 = vsub.f32 1.0, %v219
    %v221 = vmul.f32 %v218, %v220
    %v222 = vadd.f32 %v218, %v221
    %vm223 = vweird.f32 %v217
    %vm224 = vweird.f32 %v218
    %vm225 = vmor %vm223, %vm224
    %v226 = vsel %vm225, %v218, %v222
    %v227 = vand.u32 2147483647, %v217
    %vm228 = vcmp.eq.f32.partialorder %v227, 8.507059e+37
    %v229 = vand.u32 %v217, 2147483648
    %v230 = vor.u32 1.1754944e-38, %v229
    %v231 = vsel %vm228, %v230, %v226
    %v232 = vmul.f32 %v215, %v231
    %233 = vst [vmem:[#allocation10] sm:$0xff] %v232
    // Predicated region
    $region46: #{tpu_custom_call.1} parent=1 // pred_check
      _
    $region47: #{tpu_custom_call.1} parent=1 // pred_check_branch
      %235 = sbr.rel (0) target = $region49
    $region48: #{tpu_custom_call.1} parent=1 // pred_region
      %237 = vsyncadd [#allocation4], 0
      %s239 = sshll.u32 [#allocation10], 4
      %s240 = int_to_ptr.vmem [resolvable:$true] %s239
      %s241 = sshll.u32 %s7, 4
      %s242 = int_to_ptr.hbm [resolvable:$true] %s241
      %244 = dma.vmem_to_hbm [thread:$0]  %s240, 128, %s242, [#allocation4]
    $region49: #{tpu_custom_call.1} parent=1 // pred_fallthru
      _
    // Predicated region
    $region50: #{tpu_custom_call.1} parent=1 // pred_check
      _
    $region51: #{tpu_custom_call.1} parent=1 // pred_check_branch
      %246 = sbr.rel (0) target = $region53
    $region52: #{tpu_custom_call.1} parent=1 // pred_region
      %248 = dma.done [#allocation4], 128
    $region53: #{tpu_custom_call.1} parent=1 // pred_fallthru
      _
    %249 = vsyncpa [#allocation3], 1
    %250 = vsyncpa [#allocation6], 1
    %251 = vsyncpa [#allocation9], 1
    %252 = vsyncpa [#allocation4], 1

</llo_original>
